<compile_context>
chip_gen: v7x
topology: tpu7x:2x2x1
jax: 0.10.0
libtpu: 0.0.40
codegen_flags: <defaults>
</compile_context>

<pallas_src>
import functools

import jax
import jax.numpy as jnp
from jax import lax
from jax.experimental import pallas as pl
from jax.experimental.pallas import tpu as pltpu


# -----------------------------------------------------------------------------
# Pallas kernel
# -----------------------------------------------------------------------------
def _shift_flat(x, off):
    """y[:, s] = x[:, s + off] along the flat spatial axis, zero-filled outside.

    Static two-piece slice + concat: unambiguous semantics; lowers to a couple
    of lane-shift ops on a (Cin, S) bf16 tile.  (pltpu.roll + mask is the
    XLU-native alternative; this keeps the fill handling explicit.)
    """
    if off == 0:
        return x
    s = x.shape[-1]
    fill = jnp.zeros(x.shape[:-1] + (abs(off),), x.dtype)
    if off > 0:
        return jnp.concatenate([x[:, off:], fill], axis=-1)
    return jnp.concatenate([fill, x[:, :s + off]], axis=-1)


def _rconv_flat_kernel(x_ref, w_ref, m_ref, o_ref, *, bt, k, pad, width, cout,
                       activation, negative_slope):
    # x_ref: (bt, Cin, S)     f32  NCHW-flat input block (S = H*W on lanes).
    # w_ref: (k*k, Cout, Cin) bf16 per-tap weights, tap = kh*k + kw (resident).
    # m_ref: (k*k, 1, S)      f32  per-tap 'same'-padding border masks (resident).
    # o_ref: (bt, Cout, S)         NCHW-flat output block (lane-dense stores).
    spatial = x_ref.shape[-1]
    for b in range(bt):                          # static; bt is kept small
        xb = x_ref[b].astype(jnp.bfloat16)       # in-kernel cast for the MXU
        acc = jnp.zeros((cout, spatial), jnp.float32)
        tap = 0
        for kh in range(k):                      # static, unrolled (k is small)
            for kw in range(k):
                off = (kh - pad) * width + (kw - pad)
                xs = _shift_flat(xb, off)        # shifted window, zero-filled
                z = jnp.dot(w_ref[tap], xs,      # (Cout,Cin)@(Cin,S) -> f32 acc
                            preferred_element_type=jnp.float32)
                acc = acc + z * m_ref[tap]       # zero invalid border taps
                tap += 1
        if activation:                           # f32 leaky-relu epilogue
            acc = jnp.where(acc > 0, acc, negative_slope * acc)
        o_ref[b] = acc.astype(o_ref.dtype)       # full-width unmasked store


def _conv2d_same_nchw_flat_pallas(x_flat, w_taps, masks, *, k, pad, height,
                                  width, activation, negative_slope=0.01,
                                  batch_tile=None, out_dtype=jnp.float32):
    """x_flat: [B, Cin, H*W] f32, w_taps: [k*k, Cout, Cin] bf16,
       masks: [k*k, 1, H*W] f32  ->  [B, Cout, H*W] out_dtype."""
    B, cin, S = x_flat.shape
    kk, cout, cin_w = w_taps.shape
    assert kk == k * k and cin_w == cin and S == height * width

    # Batch tiling: keep several grid steps (pipelining / megacore sharding),
    # folding images per step only when the batch is large.
    bt = batch_tile
    if bt is None:
        bt = 1
        while (B % (2 * bt) == 0 and B // (2 * bt) >= 8
               and 2 * bt * cin * S * 4 <= (2 << 20)):
            bt *= 2
    assert B % bt == 0, "batch_tile must divide the batch size"
    # TODO(synk): for very large H*W (input block approaching the v7x 64 MiB
    # VMEM budget) add a halo'd spatial grid axis instead of whole-image blocks.

    # Explicit VMEM budget from the (lane/sublane padded) block sizes.
    def _tile_bytes(shape, itemsize, sub=8):
        *lead, s2, s1 = shape
        n = 1
        for d in lead:
            n *= d
        return n * (-(-s2 // sub) * sub) * (-(-s1 // 128) * 128) * itemsize

    est = 2 * (_tile_bytes((bt, cin, S), 4)            # input  (double-buffered)
               + _tile_bytes((kk, cout, cin), 2, 16)   # weights (resident)
               + _tile_bytes((kk, 1, S), 4)            # masks   (resident)
               + _tile_bytes((bt, cout, S), 4))        # output
    vmem_limit = int(min(64 * 1024 * 1024, 2 * est + (4 << 20)))

    kernel = functools.partial(
        _rconv_flat_kernel, bt=bt, k=k, pad=pad, width=width, cout=cout,
        activation=activation, negative_slope=negative_slope)

    return pl.pallas_call(
        kernel,
        out_shape=jax.ShapeDtypeStruct((B, cout, S), out_dtype),
        grid=(B // bt,),
        in_specs=[
            pl.BlockSpec((bt, cin, S), lambda b: (b, 0, 0)),
            pl.BlockSpec((kk, cout, cin), lambda b: (0, 0, 0)),   # resident
            pl.BlockSpec((kk, 1, S), lambda b: (0, 0, 0)),        # resident
        ],
        out_specs=pl.BlockSpec((bt, cout, S), lambda b: (b, 0, 0)),
        compiler_params=pltpu.CompilerParams(
            dimension_semantics=("parallel",),
            vmem_limit_bytes=vmem_limit),
    )(x_flat, w_taps, masks)


# -----------------------------------------------------------------------------
# Parameter plumbing (plain JAX glue on tiny tensors): filter bank + mixing.
# -----------------------------------------------------------------------------
def generate_filter_bank(kernel):
    """kernel: [nfb, out, in, g, k, k] -> [nfb, out, g, in, g, k, k]."""
    nfb, co, ci, g, k, _ = kernel.shape
    # TODO(synk): group orders other than 4 need interpolated rotations
    # (torchvision TTF.rotate); only exact 90-degree rotations are implemented.
    assert g == 4, "exact rotations implemented for group_order == 4 only"
    w = kernel.reshape(nfb * co * ci, g, k, k)
    banks = []
    for i in range(g):
        # TTF.rotate(img, -90*i) == clockwise rotation by 90*i == rot90(k=-i)
        rot = jnp.rot90(w, k=-i, axes=(-2, -1))
        shifted = jnp.roll(rot, shift=i, axis=1)       # cyclic shift of group dim
        banks.append(shifted.reshape(nfb, co, ci, g, k, k))
    return jnp.stack(banks, axis=2)                    # [nfb, co, g, ci, g, k, k]


def relaxed_conv_weight_oihw(kernel, relaxed_weights):
    """-> conv weight in PyTorch OIHW layout [out*g, in*g, k, k]."""
    nfb, co, ci, g, k, _ = kernel.shape
    fb = generate_filter_bank(kernel)                  # [nfb,co,g,ci,g,k,k]
    rw = relaxed_weights.T.reshape(nfb, 1, g, 1, 1, 1, 1)
    w = jnp.sum(rw * fb, axis=0)                       # [co,g,ci,g,k,k]
    return w.reshape(co * g, ci * g, k, k)             # OIHW


def _border_masks(height, width, k, pad):
    """Per-tap 'same'-padding validity masks, shape [k*k, 1, H*W] (f32 0/1)."""
    hh = jnp.arange(height)[:, None]
    ww = jnp.arange(width)[None, :]
    masks = []
    for kh in range(k):
        for kw in range(k):
            dh, dw = kh - pad, kw - pad
            m = ((hh + dh >= 0) & (hh + dh < height)
                 & (ww + dw >= 0) & (ww + dw < width))
            masks.append(m.reshape(1, height * width))
    return jnp.stack(masks, axis=0).astype(jnp.float32)


def rgroup_conv_cn_forward(x, kernel, relaxed_weights, activation=True,
                           out_dtype=jnp.float32):
    """x: [B, in, g, H, W] -> [B, out, g, H, W] (matches the PyTorch forward)."""
    B, ci, g, H, W = x.shape
    nfb, co, ci_k, g_k, k, _ = kernel.shape
    assert (ci, g) == (ci_k, g_k)
    # TODO(synk): even kernel sizes need asymmetric 'same' padding.
    assert k % 2 == 1, "odd kernel sizes only"
    pad = (k - 1) // 2

    # Weight mixing (tiny tensors) + per-tap packing [k*k, Cout, Cin] in bf16.
    w_oihw = relaxed_conv_weight_oihw(kernel, relaxed_weights)    # [Cout,Cin,k,k]
    w_taps = jnp.transpose(w_oihw, (2, 3, 0, 1)).reshape(k * k, co * g, ci * g)
    w_taps = w_taps.astype(jnp.bfloat16)
    masks = _border_masks(H, W, k, pad)

    # Input: metadata-only reshape to NCHW-flat [B, Cin, H*W].  No pad,
    # transpose or cast pass over HBM (the bf16 cast happens in-kernel).
    x_flat = x.reshape(B, ci * g, H * W)

    y = _conv2d_same_nchw_flat_pallas(
        x_flat, w_taps, masks, k=k, pad=pad, height=H, width=W,
        activation=activation, out_dtype=out_dtype)
    # Kernel writes NCHW-flat [B, out*g, H*W]; only metadata reshapes remain.
    return y.reshape(B, co, g, H, W)


# -----------------------------------------------------------------------------
# Demo / correctness check
# -----------------------------------------------------------------------------
if __name__ == "__main__":
    B, in_channels, out_channels = 2, 4, 4
    group_order, num_filter_banks, kernel_size = 4, 2, 3
    H = W = 16

    key = jax.random.PRNGKey(0)
    k_x, k_w = jax.random.split(key)

    # Deterministic parameter init (kaiming-uniform-like bound for the kernel).
    fan_in = in_channels * group_order * kernel_size * kernel_size
    a = jnp.sqrt(5.0)
    bound = jnp.sqrt(6.0 / ((1.0 + a * a) * fan_in))
    kernel = jax.random.uniform(
        k_w,
        (num_filter_banks, out_channels, in_channels, group_order,
         kernel_size, kernel_size),
        minval=-bound, maxval=bound, dtype=jnp.float32)
    relaxed_weights = jnp.ones((group_order, num_filter_banks), jnp.float32)

    x = jax.random.normal(
        k_x, (B, in_channels, group_order, H, W), dtype=jnp.float32)

    y = rgroup_conv_cn_forward(x, kernel, relaxed_weights, activation=True)
    y = jax.block_until_ready(y)
    assert y.shape == (B, out_channels, group_order, H, W)

    # Reference: XLA conv on the same bf16-rounded inputs (the Pallas kernel
    # uses bf16 MXU inputs with f32 accumulation).
    w_oihw = relaxed_conv_weight_oihw(kernel, relaxed_weights)
    w_q = w_oihw.astype(jnp.bfloat16).astype(jnp.float32)
    x_q = x.reshape(B, in_channels * group_order, H, W
                    ).astype(jnp.bfloat16).astype(jnp.float32)
    y_ref = lax.conv_general_dilated(
        x_q, w_q, window_strides=(1, 1), padding="SAME",
        dimension_numbers=("NCHW", "OIHW", "NCHW"),
        precision=lax.Precision.HIGHEST)
    y_ref = jnp.where(y_ref > 0, y_ref, 0.01 * y_ref)
    y_ref = y_ref.reshape(B, out_channels, group_order, H, W)
    assert jnp.allclose(y, y_ref, atol=1e-3, rtol=1e-3), (
        float(jnp.max(jnp.abs(y - y_ref))))

    print("KERNEL_OK")
</pallas_src>

<mosaic_0001>
module attributes {stable_mosaic.version = 11 : i64} {
  func.func @_rconv_flat_kernel(%arg0: i32, %arg1: memref<1x16x256xf32, #tpu.memory_space<vmem>>, %arg2: memref<9x16x16xbf16, #tpu.memory_space<vmem>>, %arg3: memref<9x1x256xf32, #tpu.memory_space<vmem>>, %arg4: memref<1x16x256xf32, #tpu.memory_space<vmem>>) attributes {dimension_semantics = [#tpu.dimension_semantics<parallel>], iteration_bounds = array<i64: 2>, scalar_prefetch = 0 : i64, scratch_operands = 0 : i64, tpu.core_type = #tpu.core_type<tc>, window_params = [{transform_indices = @transform_0, window_bounds = array<i64: 1, 16, 256>}, {pipeline_mode = #tpu.pipeline_mode<synchronous>, transform_indices = @transform_1, window_bounds = array<i64: 9, 16, 16>}, {pipeline_mode = #tpu.pipeline_mode<synchronous>, transform_indices = @transform_2, window_bounds = array<i64: 9, 1, 256>}, {transform_indices = @transform_3, window_bounds = array<i64: 1, 16, 256>}]} {
    %c0 = arith.constant 0 : index
    %c0_0 = arith.constant 0 : index
    %c0_1 = arith.constant 0 : index
    %0 = vector.load %arg1[%c0, %c0_0, %c0_1] : memref<1x16x256xf32, #tpu.memory_space<vmem>>, vector<1x16x256xf32>
    %1 = vector.shape_cast %0 : vector<1x16x256xf32> to vector<16x256xf32>
    %2 = arith.truncf %1 : vector<16x256xf32> to vector<16x256xbf16>
    %cst = arith.constant 0.000000e+00 : f32
    %3 = vector.broadcast %cst : f32 to vector<16x256xf32>
    %cst_2 = arith.constant 0.000000e+00 : bf16
    %4 = vector.broadcast %cst_2 : bf16 to vector<16x17xbf16>
    %5 = vector.extract_strided_slice %2 {offsets = [0, 0], sizes = [16, 239], strides = [1, 1]} : vector<16x256xbf16> to vector<16x239xbf16>
    %6 = tpu.concatenate %4, %5 in 1 : vector<16x17xbf16>, vector<16x239xbf16> -> vector<16x256xbf16>
    %c0_3 = arith.constant 0 : index
    %c0_4 = arith.constant 0 : index
    %c0_5 = arith.constant 0 : index
    %7 = vector.load %arg2[%c0_3, %c0_4, %c0_5] : memref<9x16x16xbf16, #tpu.memory_space<vmem>>, vector<1x16x16xbf16>
    %8 = vector.shape_cast %7 : vector<1x16x16xbf16> to vector<16x16xbf16>
    %cst_6 = arith.constant dense<0.000000e+00> : vector<16x256xf32>
    %9 = tpu.matmul %8, %6, %cst_6 {dimension_numbers = #tpu.dot_dimension_numbers<[1], [0], [0], [1], [0, 0, 1, 1], [], []>} : vector<16x16xbf16>, vector<16x256xbf16>, vector<16x256xf32> -> vector<16x256xf32>
    %c0_7 = arith.constant 0 : index
    %c0_8 = arith.constant 0 : index
    %c0_9 = arith.constant 0 : index
    %10 = vector.load %arg3[%c0_7, %c0_8, %c0_9] : memref<9x1x256xf32, #tpu.memory_space<vmem>>, vector<1x1x256xf32>
    %11 = vector.shape_cast %10 : vector<1x1x256xf32> to vector<1x256xf32>
    %12 = vector.broadcast %11 : vector<1x256xf32> to vector<16x256xf32>
    %13 = arith.mulf %9, %12 : vector<16x256xf32>
    %14 = arith.addf %3, %13 : vector<16x256xf32>
    %cst_10 = arith.constant 0.000000e+00 : bf16
    %15 = vector.broadcast %cst_10 : bf16 to vector<16x16xbf16>
    %16 = vector.extract_strided_slice %2 {offsets = [0, 0], sizes = [16, 240], strides = [1, 1]} : vector<16x256xbf16> to vector<16x240xbf16>
    %17 = tpu.concatenate %15, %16 in 1 : vector<16x16xbf16>, vector<16x240xbf16> -> vector<16x256xbf16>
    %c1 = arith.constant 1 : index
    %c0_11 = arith.constant 0 : index
    %c0_12 = arith.constant 0 : index
    %18 = vector.load %arg2[%c1, %c0_11, %c0_12] : memref<9x16x16xbf16, #tpu.memory_space<vmem>>, vector<1x16x16xbf16>
    %19 = vector.shape_cast %18 : vector<1x16x16xbf16> to vector<16x16xbf16>
    %cst_13 = arith.constant dense<0.000000e+00> : vector<16x256xf32>
    %20 = tpu.matmul %19, %17, %cst_13 {dimension_numbers = #tpu.dot_dimension_numbers<[1], [0], [0], [1], [0, 0, 1, 1], [], []>} : vector<16x16xbf16>, vector<16x256xbf16>, vector<16x256xf32> -> vector<16x256xf32>
    %c1_14 = arith.constant 1 : index
    %c0_15 = arith.constant 0 : index
    %c0_16 = arith.constant 0 : index
    %21 = vector.load %arg3[%c1_14, %c0_15, %c0_16] : memref<9x1x256xf32, #tpu.memory_space<vmem>>, vector<1x1x256xf32>
    %22 = vector.shape_cast %21 : vector<1x1x256xf32> to vector<1x256xf32>
    %23 = vector.broadcast %22 : vector<1x256xf32> to vector<16x256xf32>
    %24 = arith.mulf %20, %23 : vector<16x256xf32>
    %25 = arith.addf %14, %24 : vector<16x256xf32>
    %cst_17 = arith.constant 0.000000e+00 : bf16
    %26 = vector.broadcast %cst_17 : bf16 to vector<16x15xbf16>
    %27 = vector.extract_strided_slice %2 {offsets = [0, 0], sizes = [16, 241], strides = [1, 1]} : vector<16x256xbf16> to vector<16x241xbf16>
    %28 = tpu.concatenate %26, %27 in 1 : vector<16x15xbf16>, vector<16x241xbf16> -> vector<16x256xbf16>
    %c2 = arith.constant 2 : index
    %c0_18 = arith.constant 0 : index
    %c0_19 = arith.constant 0 : index
    %29 = vector.load %arg2[%c2, %c0_18, %c0_19] : memref<9x16x16xbf16, #tpu.memory_space<vmem>>, vector<1x16x16xbf16>
    %30 = vector.shape_cast %29 : vector<1x16x16xbf16> to vector<16x16xbf16>
    %cst_20 = arith.constant dense<0.000000e+00> : vector<16x256xf32>
    %31 = tpu.matmul %30, %28, %cst_20 {dimension_numbers = #tpu.dot_dimension_numbers<[1], [0], [0], [1], [0, 0, 1, 1], [], []>} : vector<16x16xbf16>, vector<16x256xbf16>, vector<16x256xf32> -> vector<16x256xf32>
    %c2_21 = arith.constant 2 : index
    %c0_22 = arith.constant 0 : index
    %c0_23 = arith.constant 0 : index
    %32 = vector.load %arg3[%c2_21, %c0_22, %c0_23] : memref<9x1x256xf32, #tpu.memory_space<vmem>>, vector<1x1x256xf32>
    %33 = vector.shape_cast %32 : vector<1x1x256xf32> to vector<1x256xf32>
    %34 = vector.broadcast %33 : vector<1x256xf32> to vector<16x256xf32>
    %35 = arith.mulf %31, %34 : vector<16x256xf32>
    %36 = arith.addf %25, %35 : vector<16x256xf32>
    %cst_24 = arith.constant 0.000000e+00 : bf16
    %37 = vector.broadcast %cst_24 : bf16 to vector<16x1xbf16>
    %38 = vector.extract_strided_slice %2 {offsets = [0, 0], sizes = [16, 255], strides = [1, 1]} : vector<16x256xbf16> to vector<16x255xbf16>
    %39 = tpu.concatenate %37, %38 in 1 : vector<16x1xbf16>, vector<16x255xbf16> -> vector<16x256xbf16>
    %c3 = arith.constant 3 : index
    %c0_25 = arith.constant 0 : index
    %c0_26 = arith.constant 0 : index
    %40 = vector.load %arg2[%c3, %c0_25, %c0_26] : memref<9x16x16xbf16, #tpu.memory_space<vmem>>, vector<1x16x16xbf16>
    %41 = vector.shape_cast %40 : vector<1x16x16xbf16> to vector<16x16xbf16>
    %cst_27 = arith.constant dense<0.000000e+00> : vector<16x256xf32>
    %42 = tpu.matmul %41, %39, %cst_27 {dimension_numbers = #tpu.dot_dimension_numbers<[1], [0], [0], [1], [0, 0, 1, 1], [], []>} : vector<16x16xbf16>, vector<16x256xbf16>, vector<16x256xf32> -> vector<16x256xf32>
    %c3_28 = arith.constant 3 : index
    %c0_29 = arith.constant 0 : index
    %c0_30 = arith.constant 0 : index
    %43 = vector.load %arg3[%c3_28, %c0_29, %c0_30] : memref<9x1x256xf32, #tpu.memory_space<vmem>>, vector<1x1x256xf32>
    %44 = vector.shape_cast %43 : vector<1x1x256xf32> to vector<1x256xf32>
    %45 = vector.broadcast %44 : vector<1x256xf32> to vector<16x256xf32>
    %46 = arith.mulf %42, %45 : vector<16x256xf32>
    %47 = arith.addf %36, %46 : vector<16x256xf32>
    %c4 = arith.constant 4 : index
    %c0_31 = arith.constant 0 : index
    %c0_32 = arith.constant 0 : index
    %48 = vector.load %arg2[%c4, %c0_31, %c0_32] : memref<9x16x16xbf16, #tpu.memory_space<vmem>>, vector<1x16x16xbf16>
    %49 = vector.shape_cast %48 : vector<1x16x16xbf16> to vector<16x16xbf16>
    %cst_33 = arith.constant dense<0.000000e+00> : vector<16x256xf32>
    %50 = tpu.matmul %49, %2, %cst_33 {dimension_numbers = #tpu.dot_dimension_numbers<[1], [0], [0], [1], [0, 0, 1, 1], [], []>} : vector<16x16xbf16>, vector<16x256xbf16>, vector<16x256xf32> -> vector<16x256xf32>
    %c4_34 = arith.constant 4 : index
    %c0_35 = arith.constant 0 : index
    %c0_36 = arith.constant 0 : index
    %51 = vector.load %arg3[%c4_34, %c0_35, %c0_36] : memref<9x1x256xf32, #tpu.memory_space<vmem>>, vector<1x1x256xf32>
    %52 = vector.shape_cast %51 : vector<1x1x256xf32> to vector<1x256xf32>
    %53 = vector.broadcast %52 : vector<1x256xf32> to vector<16x256xf32>
    %54 = arith.mulf %50, %53 : vector<16x256xf32>
    %55 = arith.addf %47, %54 : vector<16x256xf32>
    %cst_37 = arith.constant 0.000000e+00 : bf16
    %56 = vector.broadcast %cst_37 : bf16 to vector<16x1xbf16>
    %57 = vector.extract_strided_slice %2 {offsets = [0, 1], sizes = [16, 255], strides = [1, 1]} : vector<16x256xbf16> to vector<16x255xbf16>
    %58 = tpu.concatenate %57, %56 in 1 : vector<16x255xbf16>, vector<16x1xbf16> -> vector<16x256xbf16>
    %c5 = arith.constant 5 : index
    %c0_38 = arith.constant 0 : index
    %c0_39 = arith.constant 0 : index
    %59 = vector.load %arg2[%c5, %c0_38, %c0_39] : memref<9x16x16xbf16, #tpu.memory_space<vmem>>, vector<1x16x16xbf16>
    %60 = vector.shape_cast %59 : vector<1x16x16xbf16> to vector<16x16xbf16>
    %cst_40 = arith.constant dense<0.000000e+00> : vector<16x256xf32>
    %61 = tpu.matmul %60, %58, %cst_40 {dimension_numbers = #tpu.dot_dimension_numbers<[1], [0], [0], [1], [0, 0, 1, 1], [], []>} : vector<16x16xbf16>, vector<16x256xbf16>, vector<16x256xf32> -> vector<16x256xf32>
    %c5_41 = arith.constant 5 : index
    %c0_42 = arith.constant 0 : index
    %c0_43 = arith.constant 0 : index
    %62 = vector.load %arg3[%c5_41, %c0_42, %c0_43] : memref<9x1x256xf32, #tpu.memory_space<vmem>>, vector<1x1x256xf32>
    %63 = vector.shape_cast %62 : vector<1x1x256xf32> to vector<1x256xf32>
    %64 = vector.broadcast %63 : vector<1x256xf32> to vector<16x256xf32>
    %65 = arith.mulf %61, %64 : vector<16x256xf32>
    %66 = arith.addf %55, %65 : vector<16x256xf32>
    %cst_44 = arith.constant 0.000000e+00 : bf16
    %67 = vector.broadcast %cst_44 : bf16 to vector<16x15xbf16>
    %68 = vector.extract_strided_slice %2 {offsets = [0, 15], sizes = [16, 241], strides = [1, 1]} : vector<16x256xbf16> to vector<16x241xbf16>
    %69 = tpu.concatenate %68, %67 in 1 : vector<16x241xbf16>, vector<16x15xbf16> -> vector<16x256xbf16>
    %c6 = arith.constant 6 : index
    %c0_45 = arith.constant 0 : index
    %c0_46 = arith.constant 0 : index
    %70 = vector.load %arg2[%c6, %c0_45, %c0_46] : memref<9x16x16xbf16, #tpu.memory_space<vmem>>, vector<1x16x16xbf16>
    %71 = vector.shape_cast %70 : vector<1x16x16xbf16> to vector<16x16xbf16>
    %cst_47 = arith.constant dense<0.000000e+00> : vector<16x256xf32>
    %72 = tpu.matmul %71, %69, %cst_47 {dimension_numbers = #tpu.dot_dimension_numbers<[1], [0], [0], [1], [0, 0, 1, 1], [], []>} : vector<16x16xbf16>, vector<16x256xbf16>, vector<16x256xf32> -> vector<16x256xf32>
    %c6_48 = arith.constant 6 : index
    %c0_49 = arith.constant 0 : index
    %c0_50 = arith.constant 0 : index
    %73 = vector.load %arg3[%c6_48, %c0_49, %c0_50] : memref<9x1x256xf32, #tpu.memory_space<vmem>>, vector<1x1x256xf32>
    %74 = vector.shape_cast %73 : vector<1x1x256xf32> to vector<1x256xf32>
    %75 = vector.broadcast %74 : vector<1x256xf32> to vector<16x256xf32>
    %76 = arith.mulf %72, %75 : vector<16x256xf32>
    %77 = arith.addf %66, %76 : vector<16x256xf32>
    %cst_51 = arith.constant 0.000000e+00 : bf16
    %78 = vector.broadcast %cst_51 : bf16 to vector<16x16xbf16>
    %79 = vector.extract_strided_slice %2 {offsets = [0, 16], sizes = [16, 240], strides = [1, 1]} : vector<16x256xbf16> to vector<16x240xbf16>
    %80 = tpu.concatenate %79, %78 in 1 : vector<16x240xbf16>, vector<16x16xbf16> -> vector<16x256xbf16>
    %c7 = arith.constant 7 : index
    %c0_52 = arith.constant 0 : index
    %c0_53 = arith.constant 0 : index
    %81 = vector.load %arg2[%c7, %c0_52, %c0_53] : memref<9x16x16xbf16, #tpu.memory_space<vmem>>, vector<1x16x16xbf16>
    %82 = vector.shape_cast %81 : vector<1x16x16xbf16> to vector<16x16xbf16>
    %cst_54 = arith.constant dense<0.000000e+00> : vector<16x256xf32>
    %83 = tpu.matmul %82, %80, %cst_54 {dimension_numbers = #tpu.dot_dimension_numbers<[1], [0], [0], [1], [0, 0, 1, 1], [], []>} : vector<16x16xbf16>, vector<16x256xbf16>, vector<16x256xf32> -> vector<16x256xf32>
    %c7_55 = arith.constant 7 : index
    %c0_56 = arith.constant 0 : index
    %c0_57 = arith.constant 0 : index
    %84 = vector.load %arg3[%c7_55, %c0_56, %c0_57] : memref<9x1x256xf32, #tpu.memory_space<vmem>>, vector<1x1x256xf32>
    %85 = vector.shape_cast %84 : vector<1x1x256xf32> to vector<1x256xf32>
    %86 = vector.broadcast %85 : vector<1x256xf32> to vector<16x256xf32>
    %87 = arith.mulf %83, %86 : vector<16x256xf32>
    %88 = arith.addf %77, %87 : vector<16x256xf32>
    %cst_58 = arith.constant 0.000000e+00 : bf16
    %89 = vector.broadcast %cst_58 : bf16 to vector<16x17xbf16>
    %90 = vector.extract_strided_slice %2 {offsets = [0, 17], sizes = [16, 239], strides = [1, 1]} : vector<16x256xbf16> to vector<16x239xbf16>
    %91 = tpu.concatenate %90, %89 in 1 : vector<16x239xbf16>, vector<16x17xbf16> -> vector<16x256xbf16>
    %c8 = arith.constant 8 : index
    %c0_59 = arith.constant 0 : index
    %c0_60 = arith.constant 0 : index
    %92 = vector.load %arg2[%c8, %c0_59, %c0_60] : memref<9x16x16xbf16, #tpu.memory_space<vmem>>, vector<1x16x16xbf16>
    %93 = vector.shape_cast %92 : vector<1x16x16xbf16> to vector<16x16xbf16>
    %cst_61 = arith.constant dense<0.000000e+00> : vector<16x256xf32>
    %94 = tpu.matmul %93, %91, %cst_61 {dimension_numbers = #tpu.dot_dimension_numbers<[1], [0], [0], [1], [0, 0, 1, 1], [], []>} : vector<16x16xbf16>, vector<16x256xbf16>, vector<16x256xf32> -> vector<16x256xf32>
    %c8_62 = arith.constant 8 : index
    %c0_63 = arith.constant 0 : index
    %c0_64 = arith.constant 0 : index
    %95 = vector.load %arg3[%c8_62, %c0_63, %c0_64] : memref<9x1x256xf32, #tpu.memory_space<vmem>>, vector<1x1x256xf32>
    %96 = vector.shape_cast %95 : vector<1x1x256xf32> to vector<1x256xf32>
    %97 = vector.broadcast %96 : vector<1x256xf32> to vector<16x256xf32>
    %98 = arith.mulf %94, %97 : vector<16x256xf32>
    %99 = arith.addf %88, %98 : vector<16x256xf32>
    %cst_65 = arith.constant 0.000000e+00 : f32
    %100 = vector.broadcast %cst_65 : f32 to vector<16x256xf32>
    %101 = arith.cmpf ogt, %99, %100 : vector<16x256xf32>
    %cst_66 = arith.constant 0.00999999977 : f32
    %102 = vector.broadcast %cst_66 : f32 to vector<16x256xf32>
    %103 = arith.mulf %102, %99 : vector<16x256xf32>
    %104 = arith.select %101, %99, %103 : vector<16x256xi1>, vector<16x256xf32>
    %c0_67 = arith.constant 0 : index
    %c0_68 = arith.constant 0 : index
    %c0_69 = arith.constant 0 : index
    %105 = vector.load %arg4[%c0_67, %c0_68, %c0_69] : memref<1x16x256xf32, #tpu.memory_space<vmem>>, vector<1x16x256xf32>
    %106 = vector.shape_cast %105 : vector<1x16x256xf32> to vector<16x256xf32>
    %107 = vector.shape_cast %104 : vector<16x256xf32> to vector<1x16x256xf32>
    tpu.vector_store %arg4[%c0_67, %c0_68, %c0_69], %107 {strides = array<i32>} : memref<1x16x256xf32, #tpu.memory_space<vmem>>, vector<1x16x256xf32>,
    return
  }
  func.func @transform_0(%arg0: i32) -> (i32, i32, i32) {
    %c0_i32 = arith.constant 0 : i32
    %c0_i32_0 = arith.constant 0 : i32
    %c0_i32_1 = arith.constant 0 : i32
    return %arg0, %c0_i32, %c0_i32_0 : i32, i32, i32
  }
  func.func @transform_1(%arg0: i32) -> (i32, i32, i32) {
    %c0_i32 = arith.constant 0 : i32
    %c0_i32_0 = arith.constant 0 : i32
    %c0_i32_1 = arith.constant 0 : i32
    %c0_i32_2 = arith.constant 0 : i32
    return %c0_i32, %c0_i32_0, %c0_i32_1 : i32, i32, i32
  }
  func.func @transform_2(%arg0: i32) -> (i32, i32, i32) {
    %c0_i32 = arith.constant 0 : i32
    %c0_i32_0 = arith.constant 0 : i32
    %c0_i32_1 = arith.constant 0 : i32
    %c0_i32_2 = arith.constant 0 : i32
    return %c0_i32, %c0_i32_0, %c0_i32_1 : i32, i32, i32
  }
  func.func @transform_3(%arg0: i32) -> (i32, i32, i32) {
    %c0_i32 = arith.constant 0 : i32
    %c0_i32_0 = arith.constant 0 : i32
    %c0_i32_1 = arith.constant 0 : i32
    return %arg0, %c0_i32, %c0_i32_0 : i32, i32, i32
  }
}

</mosaic_0001>

<llo_original>
// kernel: tpu_custom_call.1
$region0: #{tpu_custom_call.1}
  #allocation0 [shape = 'u32[]', space=smem, size = 0x4, offset = 0x4, fixed_abs, tag = 'smem constant byte address 0x4 - core index']
  #allocation1 [shape = 'u32[144,128]{1,0:T(1,128)}', space=vmem, size = 0x12000, scoped, tag = 'internal scratch']
  %s0 = inlined_call_operand.hbm [shape: f32[2,16,256], index: 0, kind: input, shape index: {}]
  %s1 = inlined_call_operand.hbm [shape: bf16[9,16,16], index: 1, kind: input, shape index: {}]
  %s2 = inlined_call_operand.hbm [shape: f32[9,1,256], index: 2, kind: input, shape index: {}]
  %s3 = inlined_call_operand.hbm [shape: f32[2,16,256], index: 3, kind: output, shape index: {}]
  %s4 = sld [smem:[#allocation0]]
  $region57: #{tpu_custom_call.1} parent=0
    _
  %s6 = ssub.s32 1, %s4
  %s7 = scalar_select 0, %s6, %s4
  $region1: #{tpu_custom_call.1} parent=0
    #allocation2 [shape = 'u8[32768]{0}', space=vmem, size = 0x8000, scoped, tag = 'input window, operand 0']
    #allocation3 [shape = 's32[2]{0}', space=sflag, size = 0x8, scoped, tag = 'scoped memory for tpu_custom_call.1']
    #allocation4 [shape = 's32[2]{0}', space=sflag, size = 0x8, scoped, tag = 'scoped memory for tpu_custom_call.1']
    #allocation5 [shape = 'u8[36864]{0}', space=vmem, size = 0x9000, scoped, tag = 'input window, operand 1, single buffered']
    #allocation6 [shape = 's32[1]{0}', space=sflag, size = 0x4, scoped, tag = 'scoped memory for tpu_custom_call.1']
    #allocation7 [shape = 'u8[9216]{0}', space=vmem, size = 0x2400, scoped, tag = 'input window, operand 2, single buffered']
    #allocation8 [shape = 'u8[32768]{0}', space=vmem, size = 0x8000, scoped, tag = 'output window, operand 0']
    %8 = vsyncpa [#allocation3], 0
    %s9 = scalar_lea.sflag [#allocation3], 1
    %10 = vsyncpa %s9, 0
    %11 = vsyncpa [#allocation6], 0
    %12 = vsyncpa [#allocation4], 0
    %s13 = scalar_lea.sflag [#allocation4], 1
    %14 = vsyncpa %s13, 0
    loop: start=0, step=1, limit=4
    $region2: #{tpu_custom_call.1} parent=1 // loop_pre_header
      _
    $region3: #{tpu_custom_call.1} parent=1 // loop_header
      %s16 = sphi 0, %s20
      %p17 = scmp.ge.s32.totalorder %s16, 4
      %s26 = sphi 0, %s28
      %s29 = sphi 0, %s26
      %s30 = sphi 0, %s29
      %s46 = sphi 0, %s30
      %s50 = sphi 0, %s50
      %s52 = sphi 0, %s50
      %s53 = sphi 0, %s52
      %s67 = sphi 0, %s53
      %s71 = sphi 0, %s71
      %s73 = sphi 0, %s71
      %s74 = sphi 0, %s73
      %s88 = sphi 0, %s74
      %s94 = sphi 0, %s96
      %s97 = sphi 0, %s94
      %s98 = sphi 0, %s97
      %s114 = sphi 0, %s98
    $region4: #{tpu_custom_call.1} parent=1 // loop_header_branch
      %19 = sbr.rel (%p17) target = $region8
    $region5: #{tpu_custom_call.1} parent=1 // loop_body
      %s21 = ssub.s32 %s16, 1
      %s22 = ssub.s32 %s16, 2
      %s23 = sadd.s32 %s16, 1
      %s24 = ssub.s32 %s16, %s23
      %p25 = scmp.eq.s32.totalorder %s24, 0
      %s27 = sadd.s32 %s26, 1
      %s28 = scalar_select %p25, %s26, %s27
      %p31 = pneg %p25
      %p32 = scmp.eq.s32.totalorder %s16, 1
      %p33 = por %p31, %p32
      %p34 = scmp.ne.s32.totalorder %s26, %s29
      %p35 = scmp.eq.s32.totalorder %s16, 0
      %p36 = por %p34, %p35
      %p37 = scmp.ne.s32.totalorder %s26, %s29
      %p38 = scmp.eq.s32.totalorder %s21, 1
      %p39 = por %p37, %p38
      %p40 = scmp.ne.s32.totalorder %s29, %s30
      %p41 = scmp.eq.s32.totalorder %s21, 0
      %p42 = por %p40, %p41
      %p43 = scmp.ne.s32.totalorder %s29, %s30
      %p44 = scmp.eq.s32.totalorder %s22, 1
      %p45 = por %p43, %p44
      %p47 = scmp.ne.s32.totalorder %s30, %s46
      %p48 = scmp.eq.s32.totalorder %s22, 0
      %p49 = por %p47, %p48
      %s51 = sadd.s32 %s50, 1
      %p54 = scmp.eq.s32.totalorder %s16, 1
      %p55 = scmp.ne.s32.totalorder %s50, %s52
      %p56 = scmp.eq.s32.totalorder %s16, 0
      %p57 = por %p55, %p56
      %p58 = scmp.ne.s32.totalorder %s50, %s52
      %p59 = scmp.eq.s32.totalorder %s21, 1
      %p60 = por %p58, %p59
      %p61 = scmp.ne.s32.totalorder %s52, %s53
      %p62 = scmp.eq.s32.totalorder %s21, 0
      %p63 = por %p61, %p62
      %p64 = scmp.ne.s32.totalorder %s52, %s53
      %p65 = scmp.eq.s32.totalorder %s22, 1
      %p66 = por %p64, %p65
      %p68 = scmp.ne.s32.totalorder %s53, %s67
      %p69 = scmp.eq.s32.totalorder %s22, 0
      %p70 = por %p68, %p69
      %s72 = sadd.s32 %s71, 1
      %p75 = scmp.eq.s32.totalorder %s16, 1
      %p76 = scmp.ne.s32.totalorder %s71, %s73
      %p77 = scmp.eq.s32.totalorder %s16, 0
      %p78 = por %p76, %p77
      %p79 = scmp.ne.s32.totalorder %s71, %s73
      %p80 = scmp.eq.s32.totalorder %s21, 1
      %p81 = por %p79, %p80
      %p82 = scmp.ne.s32.totalorder %s73, %s74
      %p83 = scmp.eq.s32.totalorder %s21, 0
      %p84 = por %p82, %p83
      %p85 = scmp.ne.s32.totalorder %s73, %s74
      %p86 = scmp.eq.s32.totalorder %s22, 1
      %p87 = por %p85, %p86
      %p89 = scmp.ne.s32.totalorder %s74, %s88
      %p90 = scmp.eq.s32.totalorder %s22, 0
      %p91 = por %p89, %p90
      %s92 = ssub.s32 %s16, %s23
      %p93 = scmp.eq.s32.totalorder %s92, 0
      %s95 = sadd.s32 %s94, 1
      %s96 = scalar_select %p93, %s94, %s95
      %p99 = pneg %p93
      %p100 = scmp.eq.s32.totalorder %s16, 1
      %p101 = por %p99, %p100
      %p102 = scmp.ne.s32.totalorder %s94, %s97
      %p103 = scmp.eq.s32.totalorder %s16, 0
      %p104 = por %p102, %p103
      %p105 = scmp.ne.s32.totalorder %s94, %s97
      %p106 = scmp.eq.s32.totalorder %s21, 1
      %p107 = por %p105, %p106
      %p108 = scmp.ne.s32.totalorder %s97, %s98
      %p109 = scmp.eq.s32.totalorder %s21, 0
      %p110 = por %p108, %p109
      %p111 = scmp.ne.s32.totalorder %s97, %s98
      %p112 = scmp.eq.s32.totalorder %s22, 1
      %p113 = por %p111, %p112
      %p115 = scmp.ne.s32.totalorder %s98, %s114
      %p116 = scmp.eq.s32.totalorder %s22, 0
      %p117 = por %p115, %p116
      %p118 = scmp.le.s32.totalorder 1, %s16
      %p119 = scmp.lt.s32.totalorder %s16, 3
      %p120 = pnand %p118, %p119
      %p121 = pneg %p120
      // Predicated region
      $region9: #{tpu_custom_call.1} parent=5 // pred_check
        _
      $region10: #{tpu_custom_call.1} parent=5 // pred_check_branch
        %123 = sbr.rel (%p120) target = $region12
      $region11: #{tpu_custom_call.1} parent=5 // pred_region
        %s124 = ssub.s32 %s16, 1
        // Predicated region
        $region13: #{tpu_custom_call.1} parent=11 // pred_check
          %p125 = pneg %p63
        $region14: #{tpu_custom_call.1} parent=11 // pred_check_branch
          %127 = sbr.rel (%p125) target = $region16
        $region15: #{tpu_custom_call.1} parent=11 // pred_region
          %s129 = ssub.s32 1152, 1152
          %130 = vsyncadd [#allocation6], %s129
          %s131 = sshll.u32 [#allocation5], 4
          %s132 = int_to_ptr.vmem [resolvable:$true] %s131
          %137 = dma.hbm_to_vmem [thread:$0]  %s1, 1152, %s132, [#allocation6], 64, 64, 4
        $region16: #{tpu_custom_call.1} parent=11 // pred_fallthru
          _
        // Predicated region
        $region17: #{tpu_custom_call.1} parent=11 // pred_check
          %p138 = pneg %p84
        $region18: #{tpu_custom_call.1} parent=11 // pred_check_branch
          %140 = sbr.rel (%p138) target = $region20
        $region19: #{tpu_custom_call.1} parent=11 // pred_region
          %s142 = ssub.s32 288, 288
          %143 = vsyncadd [#allocation6], %s142
          %s144 = sshll.u32 [#allocation7], 4
          %s145 = int_to_ptr.vmem [resolvable:$true] %s144
          %150 = dma.hbm_to_vmem [thread:$0]  %s2, 288, %s145, [#allocation6], 32, 32, 2
        $region20: #{tpu_custom_call.1} parent=11 // pred_fallthru
          _
      $region12: #{tpu_custom_call.1} parent=5 // pred_fallthru
        _
      %p151 = scmp.lt.s32.totalorder %s16, 2
      // Predicated region
      $region21: #{tpu_custom_call.1} parent=5 // pred_check
        %p152 = pneg %p151
      $region22: #{tpu_custom_call.1} parent=5 // pred_check_branch
        %154 = sbr.rel (%p152) target = $region24
      $region23: #{tpu_custom_call.1} parent=5 // pred_region
        // Predicated region
        $region25: #{tpu_custom_call.1} parent=23 // pred_check
          %p155 = pneg %p36
        $region26: #{tpu_custom_call.1} parent=23 // pred_check_branch
          %157 = sbr.rel (%p155) target = $region28
        $region27: #{tpu_custom_call.1} parent=23 // pred_region
          %s158 = sand.u32 %s26, 1
          %s159 = scalar_lea.sflag [#allocation3], %s158
          %s160 = sand.u32 %s26, 1
          %s161 = smul.addr %s160, 32
          %s162 = scalar_lea.vmem [#allocation2], %s161
          %s164 = ssub.s32 512, 512
          %165 = vsyncadd %s159, %s164
          %s166 = smul.addr %s16, 4
          %s167 = smul.addr %s166, 128
          %s168 = scalar_lea.hbm %s0, %s167
          %s169 = sshll.u32 %s162, 4
          %s170 = int_to_ptr.vmem [resolvable:$true] %s169
          %175 = dma.hbm_to_vmem [thread:$0]  %s168, 512, %s170, %s159, 256, 256, 16
        $region28: #{tpu_custom_call.1} parent=23 // pred_fallthru
          _
      $region24: #{tpu_custom_call.1} parent=5 // pred_fallthru
        _
      %p176 = scmp.le.s32.totalorder 1, %s16
      %p177 = scmp.lt.s32.totalorder %s16, 3
      %p178 = pnand %p176, %p177
      %p179 = pneg %p178
      // Predicated region
      $region29: #{tpu_custom_call.1} parent=5 // pred_check
        _
      $region30: #{tpu_custom_call.1} parent=5 // pred_check_branch
        %181 = sbr.rel (%p178) target = $region32
      $region31: #{tpu_custom_call.1} parent=5 // pred_region
        %s182 = ssub.s32 %s16, 1
        %s183 = sand.u32 %s29, 1
        %s184 = scalar_lea.sflag [#allocation3], %s183
        %s185 = sand.u32 %s29, 1
        %s186 = smul.addr %s185, 32
        %s187 = scalar_lea.vmem [#allocation2], %s186
        // Predicated region
        $region33: #{tpu_custom_call.1} parent=31 // pred_check
          %p188 = pneg %p42
        $region34: #{tpu_custom_call.1} parent=31 // pred_check_branch
          %190 = sbr.rel (%p188) target = $region36
        $region35: #{tpu_custom_call.1} parent=31 // pred_region
          %191 = dma.done %s184, 512
        $region36: #{tpu_custom_call.1} parent=31 // pred_fallthru
          _
        // Predicated region
        $region37: #{tpu_custom_call.1} parent=31 // pred_check
          %p192 = pneg %p63
        $region38: #{tpu_custom_call.1} parent=31 // pred_check_branch
          %194 = sbr.rel (%p192) target = $region40
        $region39: #{tpu_custom_call.1} parent=31 // pred_region
          %195 = dma.done [#allocation6], 1152
        $region40: #{tpu_custom_call.1} parent=31 // pred_fallthru
          _
        // Predicated region
        $region41: #{tpu_custom_call.1} parent=31 // pred_check
          %p196 = pneg %p84
        $region42: #{tpu_custom_call.1} parent=31 // pred_check_branch
          %198 = sbr.rel (%p196) target = $region44
        $region43: #{tpu_custom_call.1} parent=31 // pred_region
          %199 = dma.done [#allocation6], 288
        $region44: #{tpu_custom_call.1} parent=31 // pred_fallthru
          _
        %s200 = sand.u32 %s29, 1
        %s201 = scalar_lea.sflag [#allocation3], %s200
        %s202 = sand.u32 %s29, 1
        %s203 = smul.addr %s202, 32
        %s204 = scalar_lea.vmem [#allocation2], %s203
        %p205 = pneg %p42
        %p206 = pneg %p39
        %p207 = pneg %p63
        %p208 = pneg %p60
        %p209 = pneg %p84
        %p210 = pneg %p81
        %p211 = pneg %p110
        %p212 = pneg %p107
        %s213 = sand.u32 %s97, 1
        %s214 = scalar_lea.sflag [#allocation4], %s213
        %s215 = sand.u32 %s97, 1
        %s216 = smul.addr %s215, 32
        %s217 = scalar_lea.vmem [#allocation8], %s216
        %v219 = vld [vmem:[%s187] sm:$0xff]
        %v220 = vld [vmem:[%s187 + $0x8] sm:$0xff]
        %v221 = vld [vmem:[%s187 + $0x10] sm:$0xff]
        %v222 = vld [vmem:[%s187 + $0x18] sm:$0xff]
        %v223 = vpack.c.bf16 %v221, %v219
        %v224 = vpack.c.bf16 %v222, %v220
        %227 = vrot.lane.b32.xlu0 %v223, 17
        %v228 = vpop.permute.xlu0 %227
        %229 = vrot.lane.b32.xlu0 %v224, 17
        %v230 = vpop.permute.xlu0 %229
        %vm231 = vcmask 138240
        %v232 = vsel %vm231, %v228, %v230
        %vm234 = vcmask 138240
        %v237 = vsel %vm234, 0, %v228
        %v239 = vld [vmem:[#allocation5] sm:$0xf]
        %v240 = vld [vmem:[#allocation5 + $0x4] sm:$0xf]
        %v243 = vunpack.c.l.b16 %v239
        %v244 = vunpack.c.l.b16 %v240
        %v245 = vpack.c.b16 %v244, %v243
        %vm246 = vcmask 130048
        %v248 = vsel %vm246, %v245, 0
        %250 = vmatprep.subr.bf16.mxu0 %v232
        %251 = vmatpush1.bf16.msra.mxu0 %v237
        %252 = vmatprep.subr.bf16.mxu0 0
        %253 = vmatpush1.bf16.msra.mxu0 0
        %254 = vmatprep.subr.bf16.mxu0 0
        %255 = vmatpush1.bf16.msra.mxu0 0
        %256 = vmatprep.subr.bf16.mxu0 0
        %257 = vmatpush1.bf16.msra.mxu0 0
        %258 = vmatprep.subr.bf16.mxu0 0
        %259 = vmatpush1.bf16.msra.mxu0 0
        %260 = vmatprep.subr.bf16.mxu0 0
        %261 = vmatpush1.bf16.msra.mxu0 0
        %262 = vmatprep.subr.bf16.mxu0 0
        %263 = vmatpush1.bf16.msra.mxu0 0
        %264 = vmatprep.subr.bf16.mxu0 0
        %265 = vmatpush1.bf16.msra.mxu0 0
        %266 = vmatprep.subr.bf16.mxu0 0
        %267 = vmatpush1.bf16.msra.mxu0 0
        %268 = vmatprep.subr.bf16.mxu0 0
        %269 = vmatpush1.bf16.msra.mxu0 0
        %270 = vmatprep.subr.bf16.mxu0 0
        %271 = vmatpush1.bf16.msra.mxu0 0
        %272 = vmatprep.subr.bf16.mxu0 0
        %273 = vmatpush1.bf16.msra.mxu0 0
        %274 = vmatprep.subr.bf16.mxu0 0
        %275 = vmatpush1.bf16.msra.mxu0 0
        %276 = vmatprep.subr.bf16.mxu0 0
        %277 = vmatpush1.bf16.msra.mxu0 0
        %278 = vmatprep.subr.bf16.mxu0 0
        %279 = vmatpush1.bf16.msra.mxu0 0
        %280 = vmatprep.subr.bf16.mxu0 0
        %281 = vmatpush1.bf16.msra.mxu0 0
        %282 = vmatprep.mubr.bf16.mxu0 0
        %283 = vmatmul.mubr.bf16.gmra.mrb[0].mxu0 %v248
        %v284 = vpop.f32.mrb[0].mxu0
        %v285 = vadd.f32 0.0, %v284
        %v286 = vpop.f32.mrb[0].mxu0
        %v287 = vadd.f32 0.0, %v286
        %v288 = vpop.f32.mrb[0].mxu0
        %v289 = vadd.f32 0.0, %v288
        %v290 = vpop.f32.mrb[0].mxu0
        %v291 = vadd.f32 0.0, %v290
        %292 = vdwg.mxu0
        %v293 = vld [vmem:[#allocation7] sm:$0x3]
        %v295 = vlaneseq
        %v296 = vshrl.u32 %v295, 7
        %v297 = vsub.s32 0, %v296
        %v298 = vrot.slane %v293, %v297
        %v299 = vlaneseq
        %v300 = vshrl.u32 %v299, 7
        %v301 = vsub.s32 1, %v300
        %v302 = vrot.slane %v293, %v301
        %v305 = vmul.f32 %v285, %v298
        %v306 = vmul.f32 %v287, %v302
        %v307 = vmul.f32 %v289, %v298
        %v308 = vmul.f32 %v291, %v302
        %v309 = vadd.f32 %v305, 0.0
        %v310 = vadd.f32 %v306, 0.0
        %v311 = vadd.f32 %v307, 0.0
        %v312 = vadd.f32 %v308, 0.0
        %313 = vrot.lane.b32.xlu0 %v223, 16
        %v314 = vpop.permute.xlu0 %313
        %315 = vrot.lane.b32.xlu0 %v224, 16
        %v316 = vpop.permute.xlu0 %315
        %vm317 = vcmask 130048
        %v318 = vsel %vm317, %v314, %v316
        %v321 = vsel %vm246, 0, %v314
        %s323 = scalar_lea.vmem [#allocation5], 8
        %v324 = vld [vmem:[%s323] sm:$0xf]
        %v325 = vld [vmem:[%s323 + $0x4] sm:$0xf]
        %v328 = vunpack.c.l.b16 %v324
        %v329 = vunpack.c.l.b16 %v325
        %v330 = vpack.c.b16 %v329, %v328
        %v332 = vsel %vm246, %v330, 0
        %334 = vmatprep.subr.bf16.mxu0 %v318
        %335 = vmatpush1.bf16.msra.mxu0 %v321
        %336 = vmatprep.subr.bf16.mxu0 0
        %337 = vmatpush1.bf16.msra.mxu0 0
        %338 = vmatprep.subr.bf16.mxu0 0
        %339 = vmatpush1.bf16.msra.mxu0 0
        %340 = vmatprep.subr.bf16.mxu0 0
        %341 = vmatpush1.bf16.msra.mxu0 0
        %342 = vmatprep.subr.bf16.mxu0 0
        %343 = vmatpush1.bf16.msra.mxu0 0
        %344 = vmatprep.subr.bf16.mxu0 0
        %345 = vmatpush1.bf16.msra.mxu0 0
        %346 = vmatprep.subr.bf16.mxu0 0
        %347 = vmatpush1.bf16.msra.mxu0 0
        %348 = vmatprep.subr.bf16.mxu0 0
        %349 = vmatpush1.bf16.msra.mxu0 0
        %350 = vmatprep.subr.bf16.mxu0 0
        %351 = vmatpush1.bf16.msra.mxu0 0
        %352 = vmatprep.subr.bf16.mxu0 0
        %353 = vmatpush1.bf16.msra.mxu0 0
        %354 = vmatprep.subr.bf16.mxu0 0
        %355 = vmatpush1.bf16.msra.mxu0 0
        %356 = vmatprep.subr.bf16.mxu0 0
        %357 = vmatpush1.bf16.msra.mxu0 0
        %358 = vmatprep.subr.bf16.mxu0 0
        %359 = vmatpush1.bf16.msra.mxu0 0
        %360 = vmatprep.subr.bf16.mxu0 0
        %361 = vmatpush1.bf16.msra.mxu0 0
        %362 = vmatprep.subr.bf16.mxu0 0
        %363 = vmatpush1.bf16.msra.mxu0 0
        %364 = vmatprep.subr.bf16.mxu0 0
        %365 = vmatpush1.bf16.msra.mxu0 0
        %366 = vmatprep.mubr.bf16.mxu0 0
        %367 = vmatmul.mubr.bf16.gmra.mrb[0].mxu0 %v332
        %v368 = vpop.f32.mrb[0].mxu0
        %v369 = vadd.f32 0.0, %v368
        %v370 = vpop.f32.mrb[0].mxu0
        %v371 = vadd.f32 0.0, %v370
        %v372 = vpop.f32.mrb[0].mxu0
        %v373 = vadd.f32 0.0, %v372
        %v374 = vpop.f32.mrb[0].mxu0
        %v375 = vadd.f32 0.0, %v374
        %376 = vdwg.mxu0
        %s377 = scalar_lea.vmem [#allocation7], 2
        %v378 = vld [vmem:[%s377] sm:$0x3]
        %v380 = vlaneseq
        %v381 = vshrl.u32 %v380, 7
        %v382 = vsub.s32 0, %v381
        %v383 = vrot.slane %v378, %v382
        %v384 = vlaneseq
        %v385 = vshrl.u32 %v384, 7
        %v386 = vsub.s32 1, %v385
        %v387 = vrot.slane %v378, %v386
        %v390 = vmul.f32 %v369, %v383
        %v391 = vmul.f32 %v371, %v387
        %v392 = vmul.f32 %v373, %v383
        %v393 = vmul.f32 %v375, %v387
        %v394 = vadd.f32 %v309, %v390
        %v395 = vadd.f32 %v310, %v391
        %v396 = vadd.f32 %v311, %v392
        %v397 = vadd.f32 %v312, %v393
        %398 = vrot.lane.b32.xlu0 %v223, 15
        %v399 = vpop.permute.xlu0 %398
        %400 = vrot.lane.b32.xlu0 %v224, 15
        %v401 = vpop.permute.xlu0 %400
        %vm402 = vcmask 121856
        %v403 = vsel %vm402, %v399, %v401
        %vm405 = vcmask 121856
        %v407 = vsel %vm405, 0, %v399
        %s409 = scalar_lea.vmem [#allocation5], 16
        %v410 = vld [vmem:[%s409] sm:$0xf]
        %v411 = vld [vmem:[%s409 + $0x4] sm:$0xf]
        %v414 = vunpack.c.l.b16 %v410
        %v415 = vunpack.c.l.b16 %v411
        %v416 = vpack.c.b16 %v415, %v414
        %v418 = vsel %vm246, %v416, 0
        %420 = vmatprep.subr.bf16.mxu0 %v403
        %421 = vmatpush1.bf16.msra.mxu0 %v407
        %422 = vmatprep.subr.bf16.mxu0 0
        %423 = vmatpush1.bf16.msra.mxu0 0
        %424 = vmatprep.subr.bf16.mxu0 0
        %425 = vmatpush1.bf16.msra.mxu0 0
        %426 = vmatprep.subr.bf16.mxu0 0
        %427 = vmatpush1.bf16.msra.mxu0 0
        %428 = vmatprep.subr.bf16.mxu0 0
        %429 = vmatpush1.bf16.msra.mxu0 0
        %430 = vmatprep.subr.bf16.mxu0 0
        %431 = vmatpush1.bf16.msra.mxu0 0
        %432 = vmatprep.subr.bf16.mxu0 0
        %433 = vmatpush1.bf16.msra.mxu0 0
        %434 = vmatprep.subr.bf16.mxu0 0
        %435 = vmatpush1.bf16.msra.mxu0 0
        %436 = vmatprep.subr.bf16.mxu0 0
        %437 = vmatpush1.bf16.msra.mxu0 0
        %438 = vmatprep.subr.bf16.mxu0 0
        %439 = vmatpush1.bf16.msra.mxu0 0
        %440 = vmatprep.subr.bf16.mxu0 0
        %441 = vmatpush1.bf16.msra.mxu0 0
        %442 = vmatprep.subr.bf16.mxu0 0
        %443 = vmatpush1.bf16.msra.mxu0 0
        %444 = vmatprep.subr.bf16.mxu0 0
        %445 = vmatpush1.bf16.msra.mxu0 0
        %446 = vmatprep.subr.bf16.mxu0 0
        %447 = vmatpush1.bf16.msra.mxu0 0
        %448 = vmatprep.subr.bf16.mxu0 0
        %449 = vmatpush1.bf16.msra.mxu0 0
        %450 = vmatprep.subr.bf16.mxu0 0
        %451 = vmatpush1.bf16.msra.mxu0 0
        %452 = vmatprep.mubr.bf16.mxu0 0
        %453 = vmatmul.mubr.bf16.gmra.mrb[0].mxu0 %v418
        %v454 = vpop.f32.mrb[0].mxu0
        %v455 = vadd.f32 0.0, %v454
        %v456 = vpop.f32.mrb[0].mxu0
        %v457 = vadd.f32 0.0, %v456
        %v458 = vpop.f32.mrb[0].mxu0
        %v459 = vadd.f32 0.0, %v458
        %v460 = vpop.f32.mrb[0].mxu0
        %v461 = vadd.f32 0.0, %v460
        %462 = vdwg.mxu0
        %s463 = scalar_lea.vmem [#allocation7], 4
        %v464 = vld [vmem:[%s463] sm:$0x3]
        %v466 = vlaneseq
        %v467 = vshrl.u32 %v466, 7
        %v468 = vsub.s32 0, %v467
        %v469 = vrot.slane %v464, %v468
        %v470 = vlaneseq
        %v471 = vshrl.u32 %v470, 7
        %v472 = vsub.s32 1, %v471
        %v473 = vrot.slane %v464, %v472
        %v476 = vmul.f32 %v455, %v469
        %v477 = vmul.f32 %v457, %v473
        %v478 = vmul.f32 %v459, %v469
        %v479 = vmul.f32 %v461, %v473
        %v480 = vadd.f32 %v394, %v476
        %v481 = vadd.f32 %v395, %v477
        %v482 = vadd.f32 %v396, %v478
        %v483 = vadd.f32 %v397, %v479
        %484 = vrot.lane.b32.xlu0 %v223, 1
        %v485 = vpop.permute.xlu0 %484
        %486 = vrot.lane.b32.xlu0 %v224, 1
        %v487 = vpop.permute.xlu0 %486
        %vm488 = vcmask 7168
        %v489 = vsel %vm488, %v485, %v487
        %vm491 = vcmask 7168
        %v493 = vsel %vm491, 0, %v485
        %s495 = scalar_lea.vmem [#allocation5], 24
        %v496 = vld [vmem:[%s495] sm:$0xf]
        %v497 = vld [vmem:[%s495 + $0x4] sm:$0xf]
        %v500 = vunpack.c.l.b16 %v496
        %v501 = vunpack.c.l.b16 %v497
        %v502 = vpack.c.b16 %v501, %v500
        %v504 = vsel %vm246, %v502, 0
        %506 = vmatprep.subr.bf16.mxu0 %v489
        %507 = vmatpush1.bf16.msra.mxu0 %v493
        %508 = vmatprep.subr.bf16.mxu0 0
        %509 = vmatpush1.bf16.msra.mxu0 0
        %510 = vmatprep.subr.bf16.mxu0 0
        %511 = vmatpush1.bf16.msra.mxu0 0
        %512 = vmatprep.subr.bf16.mxu0 0
        %513 = vmatpush1.bf16.msra.mxu0 0
        %514 = vmatprep.subr.bf16.mxu0 0
        %515 = vmatpush1.bf16.msra.mxu0 0
        %516 = vmatprep.subr.bf16.mxu0 0
        %517 = vmatpush1.bf16.msra.mxu0 0
        %518 = vmatprep.subr.bf16.mxu0 0
        %519 = vmatpush1.bf16.msra.mxu0 0
        %520 = vmatprep.subr.bf16.mxu0 0
        %521 = vmatpush1.bf16.msra.mxu0 0
        %522 = vmatprep.subr.bf16.mxu0 0
        %523 = vmatpush1.bf16.msra.mxu0 0
        %524 = vmatprep.subr.bf16.mxu0 0
        %525 = vmatpush1.bf16.msra.mxu0 0
        %526 = vmatprep.subr.bf16.mxu0 0
        %527 = vmatpush1.bf16.msra.mxu0 0
        %528 = vmatprep.subr.bf16.mxu0 0
        %529 = vmatpush1.bf16.msra.mxu0 0
        %530 = vmatprep.subr.bf16.mxu0 0
        %531 = vmatpush1.bf16.msra.mxu0 0
        %532 = vmatprep.subr.bf16.mxu0 0
        %533 = vmatpush1.bf16.msra.mxu0 0
        %534 = vmatprep.subr.bf16.mxu0 0
        %535 = vmatpush1.bf16.msra.mxu0 0
        %536 = vmatprep.subr.bf16.mxu0 0
        %537 = vmatpush1.bf16.msra.mxu0 0
        %538 = vmatprep.mubr.bf16.mxu0 0
        %539 = vmatmul.mubr.bf16.gmra.mrb[0].mxu0 %v504
        %v540 = vpop.f32.mrb[0].mxu0
        %v541 = vadd.f32 0.0, %v540
        %v542 = vpop.f32.mrb[0].mxu0
        %v543 = vadd.f32 0.0, %v542
        %v544 = vpop.f32.mrb[0].mxu0
        %v545 = vadd.f32 0.0, %v544
        %v546 = vpop.f32.mrb[0].mxu0
        %v547 = vadd.f32 0.0, %v546
        %548 = vdwg.mxu0
        %s549 = scalar_lea.vmem [#allocation7], 6
        %v550 = vld [vmem:[%s549] sm:$0x3]
        %v552 = vlaneseq
        %v553 = vshrl.u32 %v552, 7
        %v554 = vsub.s32 0, %v553
        %v555 = vrot.slane %v550, %v554
        %v556 = vlaneseq
        %v557 = vshrl.u32 %v556, 7
        %v558 = vsub.s32 1, %v557
        %v559 = vrot.slane %v550, %v558
        %v562 = vmul.f32 %v541, %v555
        %v563 = vmul.f32 %v543, %v559
        %v564 = vmul.f32 %v545, %v555
        %v565 = vmul.f32 %v547, %v559
        %v566 = vadd.f32 %v480, %v562
        %v567 = vadd.f32 %v481, %v563
        %v568 = vadd.f32 %v482, %v564
        %v569 = vadd.f32 %v483, %v565
        %s570 = scalar_lea.vmem [#allocation5], 32
        %v571 = vld [vmem:[%s570] sm:$0xf]
        %v572 = vld [vmem:[%s570 + $0x4] sm:$0xf]
        %v575 = vunpack.c.l.b16 %v571
        %v576 = vunpack.c.l.b16 %v572
        %v577 = vpack.c.b16 %v576, %v575
        %v579 = vsel %vm246, %v577, 0
        %581 = vmatprep.subr.bf16.mxu0 %v224
        %582 = vmatpush1.bf16.msra.mxu0 %v223
        %583 = vmatprep.subr.bf16.mxu0 0
        %584 = vmatpush1.bf16.msra.mxu0 0
        %585 = vmatprep.subr.bf16.mxu0 0
        %586 = vmatpush1.bf16.msra.mxu0 0
        %587 = vmatprep.subr.bf16.mxu0 0
        %588 = vmatpush1.bf16.msra.mxu0 0
        %589 = vmatprep.subr.bf16.mxu0 0
        %590 = vmatpush1.bf16.msra.mxu0 0
        %591 = vmatprep.subr.bf16.mxu0 0
        %592 = vmatpush1.bf16.msra.mxu0 0
        %593 = vmatprep.subr.bf16.mxu0 0
        %594 = vmatpush1.bf16.msra.mxu0 0
        %595 = vmatprep.subr.bf16.mxu0 0
        %596 = vmatpush1.bf16.msra.mxu0 0
        %597 = vmatprep.subr.bf16.mxu0 0
        %598 = vmatpush1.bf16.msra.mxu0 0
        %599 = vmatprep.subr.bf16.mxu0 0
        %600 = vmatpush1.bf16.msra.mxu0 0
        %601 = vmatprep.subr.bf16.mxu0 0
        %602 = vmatpush1.bf16.msra.mxu0 0
        %603 = vmatprep.subr.bf16.mxu0 0
        %604 = vmatpush1.bf16.msra.mxu0 0
        %605 = vmatprep.subr.bf16.mxu0 0
        %606 = vmatpush1.bf16.msra.mxu0 0
        %607 = vmatprep.subr.bf16.mxu0 0
        %608 = vmatpush1.bf16.msra.mxu0 0
        %609 = vmatprep.subr.bf16.mxu0 0
        %610 = vmatpush1.bf16.msra.mxu0 0
        %611 = vmatprep.subr.bf16.mxu0 0
        %612 = vmatpush1.bf16.msra.mxu0 0
        %613 = vmatprep.mubr.bf16.mxu0 0
        %614 = vmatmul.mubr.bf16.gmra.mrb[0].mxu0 %v579
        %v615 = vpop.f32.mrb[0].mxu0
        %v616 = vadd.f32 0.0, %v615
        %v617 = vpop.f32.mrb[0].mxu0
        %v618 = vadd.f32 0.0, %v617
        %v619 = vpop.f32.mrb[0].mxu0
        %v620 = vadd.f32 0.0, %v619
        %v621 = vpop.f32.mrb[0].mxu0
        %v622 = vadd.f32 0.0, %v621
        %623 = vdwg.mxu0
        %s624 = scalar_lea.vmem [#allocation7], 8
        %v625 = vld [vmem:[%s624] sm:$0x3]
        %v627 = vlaneseq
        %v628 = vshrl.u32 %v627, 7
        %v629 = vsub.s32 0, %v628
        %v630 = vrot.slane %v625, %v629
        %v631 = vlaneseq
        %v632 = vshrl.u32 %v631, 7
        %v633 = vsub.s32 1, %v632
        %v634 = vrot.slane %v625, %v633
        %v637 = vmul.f32 %v616, %v630
        %v638 = vmul.f32 %v618, %v634
        %v639 = vmul.f32 %v620, %v630
        %v640 = vmul.f32 %v622, %v634
        %v641 = vadd.f32 %v566, %v637
        %v642 = vadd.f32 %v567, %v638
        %v643 = vadd.f32 %v568, %v639
        %v644 = vadd.f32 %v569, %v640
        %645 = vrot.lane.b32.xlu0 %v223, 127
        %v646 = vpop.permute.xlu0 %645
        %647 = vrot.lane.b32.xlu0 %v224, 127
        %v648 = vpop.permute.xlu0 %647
        %vm649 = vcmask 1039360
        %v650 = vsel %vm649, %v646, %v648
        %vm652 = vcmask 1039360
        %v654 = vsel %vm652, %v648, 0
        %s656 = scalar_lea.vmem [#allocation5], 40
        %v657 = vld [vmem:[%s656] sm:$0xf]
        %v658 = vld [vmem:[%s656 + $0x4] sm:$0xf]
        %v661 = vunpack.c.l.b16 %v657
        %v662 = vunpack.c.l.b16 %v658
        %v663 = vpack.c.b16 %v662, %v661
        %v665 = vsel %vm246, %v663, 0
        %667 = vmatprep.subr.bf16.mxu0 %v654
        %668 = vmatpush1.bf16.msra.mxu0 %v650
        %669 = vmatprep.subr.bf16.mxu0 0
        %670 = vmatpush1.bf16.msra.mxu0 0
        %671 = vmatprep.subr.bf16.mxu0 0
        %672 = vmatpush1.bf16.msra.mxu0 0
        %673 = vmatprep.subr.bf16.mxu0 0
        %674 = vmatpush1.bf16.msra.mxu0 0
        %675 = vmatprep.subr.bf16.mxu0 0
        %676 = vmatpush1.bf16.msra.mxu0 0
        %677 = vmatprep.subr.bf16.mxu0 0
        %678 = vmatpush1.bf16.msra.mxu0 0
        %679 = vmatprep.subr.bf16.mxu0 0
        %680 = vmatpush1.bf16.msra.mxu0 0
        %681 = vmatprep.subr.bf16.mxu0 0
        %682 = vmatpush1.bf16.msra.mxu0 0
        %683 = vmatprep.subr.bf16.mxu0 0
        %684 = vmatpush1.bf16.msra.mxu0 0
        %685 = vmatprep.subr.bf16.mxu0 0
        %686 = vmatpush1.bf16.msra.mxu0 0
        %687 = vmatprep.subr.bf16.mxu0 0
        %688 = vmatpush1.bf16.msra.mxu0 0
        %689 = vmatprep.subr.bf16.mxu0 0
        %690 = vmatpush1.bf16.msra.mxu0 0
        %691 = vmatprep.subr.bf16.mxu0 0
        %692 = vmatpush1.bf16.msra.mxu0 0
        %693 = vmatprep.subr.bf16.mxu0 0
        %694 = vmatpush1.bf16.msra.mxu0 0
        %695 = vmatprep.subr.bf16.mxu0 0
        %696 = vmatpush1.bf16.msra.mxu0 0
        %697 = vmatprep.subr.bf16.mxu0 0
        %698 = vmatpush1.bf16.msra.mxu0 0
        %699 = vmatprep.mubr.bf16.mxu0 0
        %700 = vmatmul.mubr.bf16.gmra.mrb[0].mxu0 %v665
        %v701 = vpop.f32.mrb[0].mxu0
        %v702 = vadd.f32 0.0, %v701
        %v703 = vpop.f32.mrb[0].mxu0
        %v704 = vadd.f32 0.0, %v703
        %v705 = vpop.f32.mrb[0].mxu0
        %v706 = vadd.f32 0.0, %v705
        %v707 = vpop.f32.mrb[0].mxu0
        %v708 = vadd.f32 0.0, %v707
        %709 = vdwg.mxu0
        %s710 = scalar_lea.vmem [#allocation7], 10
        %v711 = vld [vmem:[%s710] sm:$0x3]
        %v713 = vlaneseq
        %v714 = vshrl.u32 %v713, 7
        %v715 = vsub.s32 0, %v714
        %v716 = vrot.slane %v711, %v715
        %v717 = vlaneseq
        %v718 = vshrl.u32 %v717, 7
        %v719 = vsub.s32 1, %v718
        %v720 = vrot.slane %v711, %v719
        %v723 = vmul.f32 %v702, %v716
        %v724 = vmul.f32 %v704, %v720
        %v725 = vmul.f32 %v706, %v716
        %v726 = vmul.f32 %v708, %v720
        %v727 = vadd.f32 %v641, %v723
        %v728 = vadd.f32 %v642, %v724
        %v729 = vadd.f32 %v643, %v725
        %v730 = vadd.f32 %v644, %v726
        %731 = vrot.lane.b32.xlu0 %v223, 113
        %v732 = vpop.permute.xlu0 %731
        %733 = vrot.lane.b32.xlu0 %v224, 113
        %v734 = vpop.permute.xlu0 %733
        %vm735 = vcmask 924672
        %v736 = vsel %vm735, %v732, %v734
        %vm738 = vcmask 924672
        %v740 = vsel %vm738, %v734, 0
        %s742 = scalar_lea.vmem [#allocation5], 48
        %v743 = vld [vmem:[%s742] sm:$0xf]
        %v744 = vld [vmem:[%s742 + $0x4] sm:$0xf]
        %v747 = vunpack.c.l.b16 %v743
        %v748 = vunpack.c.l.b16 %v744
        %v749 = vpack.c.b16 %v748, %v747
        %v751 = vsel %vm246, %v749, 0
        %753 = vmatprep.subr.bf16.mxu0 %v740
        %754 = vmatpush1.bf16.msra.mxu0 %v736
        %755 = vmatprep.subr.bf16.mxu0 0
        %756 = vmatpush1.bf16.msra.mxu0 0
        %757 = vmatprep.subr.bf16.mxu0 0
        %758 = vmatpush1.bf16.msra.mxu0 0
        %759 = vmatprep.subr.bf16.mxu0 0
        %760 = vmatpush1.bf16.msra.mxu0 0
        %761 = vmatprep.subr.bf16.mxu0 0
        %762 = vmatpush1.bf16.msra.mxu0 0
        %763 = vmatprep.subr.bf16.mxu0 0
        %764 = vmatpush1.bf16.msra.mxu0 0
        %765 = vmatprep.subr.bf16.mxu0 0
        %766 = vmatpush1.bf16.msra.mxu0 0
        %767 = vmatprep.subr.bf16.mxu0 0
        %768 = vmatpush1.bf16.msra.mxu0 0
        %769 = vmatprep.subr.bf16.mxu0 0
        %770 = vmatpush1.bf16.msra.mxu0 0
        %771 = vmatprep.subr.bf16.mxu0 0
        %772 = vmatpush1.bf16.msra.mxu0 0
        %773 = vmatprep.subr.bf16.mxu0 0
        %774 = vmatpush1.bf16.msra.mxu0 0
        %775 = vmatprep.subr.bf16.mxu0 0
        %776 = vmatpush1.bf16.msra.mxu0 0
        %777 = vmatprep.subr.bf16.mxu0 0
        %778 = vmatpush1.bf16.msra.mxu0 0
        %779 = vmatprep.subr.bf16.mxu0 0
        %780 = vmatpush1.bf16.msra.mxu0 0
        %781 = vmatprep.subr.bf16.mxu0 0
        %782 = vmatpush1.bf16.msra.mxu0 0
        %783 = vmatprep.subr.bf16.mxu0 0
        %784 = vmatpush1.bf16.msra.mxu0 0
        %785 = vmatprep.mubr.bf16.mxu0 0
        %786 = vmatmul.mubr.bf16.gmra.mrb[0].mxu0 %v751
        %v787 = vpop.f32.mrb[0].mxu0
        %v788 = vadd.f32 0.0, %v787
        %v789 = vpop.f32.mrb[0].mxu0
        %v790 = vadd.f32 0.0, %v789
        %v791 = vpop.f32.mrb[0].mxu0
        %v792 = vadd.f32 0.0, %v791
        %v793 = vpop.f32.mrb[0].mxu0
        %v794 = vadd.f32 0.0, %v793
        %795 = vdwg.mxu0
        %s796 = scalar_lea.vmem [#allocation7], 12
        %v797 = vld [vmem:[%s796] sm:$0x3]
        %v799 = vlaneseq
        %v800 = vshrl.u32 %v799, 7
        %v801 = vsub.s32 0, %v800
        %v802 = vrot.slane %v797, %v801
        %v803 = vlaneseq
        %v804 = vshrl.u32 %v803, 7
        %v805 = vsub.s32 1, %v804
        %v806 = vrot.slane %v797, %v805
        %v809 = vmul.f32 %v788, %v802
        %v810 = vmul.f32 %v790, %v806
        %v811 = vmul.f32 %v792, %v802
        %v812 = vmul.f32 %v794, %v806
        %v813 = vadd.f32 %v727, %v809
        %v814 = vadd.f32 %v728, %v810
        %v815 = vadd.f32 %v729, %v811
        %v816 = vadd.f32 %v730, %v812
        %817 = vrot.lane.b32.xlu0 %v223, 112
        %v818 = vpop.permute.xlu0 %817
        %819 = vrot.lane.b32.xlu0 %v224, 112
        %v820 = vpop.permute.xlu0 %819
        %vm821 = vcmask 916480
        %v822 = vsel %vm821, %v818, %v820
        %vm824 = vcmask 916480
        %v826 = vsel %vm824, %v820, 0
        %s828 = scalar_lea.vmem [#allocation5], 56
        %v829 = vld [vmem:[%s828] sm:$0xf]
        %v830 = vld [vmem:[%s828 + $0x4] sm:$0xf]
        %v833 = vunpack.c.l.b16 %v829
        %v834 = vunpack.c.l.b16 %v830
        %v835 = vpack.c.b16 %v834, %v833
        %v837 = vsel %vm246, %v835, 0
        %839 = vmatprep.subr.bf16.mxu0 %v826
        %840 = vmatpush1.bf16.msra.mxu0 %v822
        %841 = vmatprep.subr.bf16.mxu0 0
        %842 = vmatpush1.bf16.msra.mxu0 0
        %843 = vmatprep.subr.bf16.mxu0 0
        %844 = vmatpush1.bf16.msra.mxu0 0
        %845 = vmatprep.subr.bf16.mxu0 0
        %846 = vmatpush1.bf16.msra.mxu0 0
        %847 = vmatprep.subr.bf16.mxu0 0
        %848 = vmatpush1.bf16.msra.mxu0 0
        %849 = vmatprep.subr.bf16.mxu0 0
        %850 = vmatpush1.bf16.msra.mxu0 0
        %851 = vmatprep.subr.bf16.mxu0 0
        %852 = vmatpush1.bf16.msra.mxu0 0
        %853 = vmatprep.subr.bf16.mxu0 0
        %854 = vmatpush1.bf16.msra.mxu0 0
        %855 = vmatprep.subr.bf16.mxu0 0
        %856 = vmatpush1.bf16.msra.mxu0 0
        %857 = vmatprep.subr.bf16.mxu0 0
        %858 = vmatpush1.bf16.msra.mxu0 0
        %859 = vmatprep.subr.bf16.mxu0 0
        %860 = vmatpush1.bf16.msra.mxu0 0
        %861 = vmatprep.subr.bf16.mxu0 0
        %862 = vmatpush1.bf16.msra.mxu0 0
        %863 = vmatprep.subr.bf16.mxu0 0
        %864 = vmatpush1.bf16.msra.mxu0 0
        %865 = vmatprep.subr.bf16.mxu0 0
        %866 = vmatpush1.bf16.msra.mxu0 0
        %867 = vmatprep.subr.bf16.mxu0 0
        %868 = vmatpush1.bf16.msra.mxu0 0
        %869 = vmatprep.subr.bf16.mxu0 0
        %870 = vmatpush1.bf16.msra.mxu0 0
        %871 = vmatprep.mubr.bf16.mxu0 0
        %872 = vmatmul.mubr.bf16.gmra.mrb[0].mxu0 %v837
        %v873 = vpop.f32.mrb[0].mxu0
        %v874 = vadd.f32 0.0, %v873
        %v875 = vpop.f32.mrb[0].mxu0
        %v876 = vadd.f32 0.0, %v875
        %v877 = vpop.f32.mrb[0].mxu0
        %v878 = vadd.f32 0.0, %v877
        %v879 = vpop.f32.mrb[0].mxu0
        %v880 = vadd.f32 0.0, %v879
        %881 = vdwg.mxu0
        %s882 = scalar_lea.vmem [#allocation7], 14
        %v883 = vld [vmem:[%s882] sm:$0x3]
        %v885 = vlaneseq
        %v886 = vshrl.u32 %v885, 7
        %v887 = vsub.s32 0, %v886
        %v888 = vrot.slane %v883, %v887
        %v889 = vlaneseq
        %v890 = vshrl.u32 %v889, 7
        %v891 = vsub.s32 1, %v890
        %v892 = vrot.slane %v883, %v891
        %v895 = vmul.f32 %v874, %v888
        %v896 = vmul.f32 %v876, %v892
        %v897 = vmul.f32 %v878, %v888
        %v898 = vmul.f32 %v880, %v892
        %v899 = vadd.f32 %v813, %v895
        %v900 = vadd.f32 %v814, %v896
        %v901 = vadd.f32 %v815, %v897
        %v902 = vadd.f32 %v816, %v898
        %903 = vrot.lane.b32.xlu0 %v223, 111
        %v904 = vpop.permute.xlu0 %903
        %905 = vrot.lane.b32.xlu0 %v224, 111
        %v906 = vpop.permute.xlu0 %905
        %vm907 = vcmask 908288
        %v908 = vsel %vm907, %v904, %v906
        %vm910 = vcmask 908288
        %v912 = vsel %vm910, %v906, 0
        %s914 = scalar_lea.vmem [#allocation5], 64
        %v915 = vld [vmem:[%s914] sm:$0xf]
        %v916 = vld [vmem:[%s914 + $0x4] sm:$0xf]
        %v919 = vunpack.c.l.b16 %v915
        %v920 = vunpack.c.l.b16 %v916
        %v921 = vpack.c.b16 %v920, %v919
        %v923 = vsel %vm246, %v921, 0
        %925 = vmatprep.subr.bf16.mxu0 %v912
        %926 = vmatpush1.bf16.msra.mxu0 %v908
        %927 = vmatprep.subr.bf16.mxu0 0
        %928 = vmatpush1.bf16.msra.mxu0 0
        %929 = vmatprep.subr.bf16.mxu0 0
        %930 = vmatpush1.bf16.msra.mxu0 0
        %931 = vmatprep.subr.bf16.mxu0 0
        %932 = vmatpush1.bf16.msra.mxu0 0
        %933 = vmatprep.subr.bf16.mxu0 0
        %934 = vmatpush1.bf16.msra.mxu0 0
        %935 = vmatprep.subr.bf16.mxu0 0
        %936 = vmatpush1.bf16.msra.mxu0 0
        %937 = vmatprep.subr.bf16.mxu0 0
        %938 = vmatpush1.bf16.msra.mxu0 0
        %939 = vmatprep.subr.bf16.mxu0 0
        %940 = vmatpush1.bf16.msra.mxu0 0
        %941 = vmatprep.subr.bf16.mxu0 0
        %942 = vmatpush1.bf16.msra.mxu0 0
        %943 = vmatprep.subr.bf16.mxu0 0
        %944 = vmatpush1.bf16.msra.mxu0 0
        %945 = vmatprep.subr.bf16.mxu0 0
        %946 = vmatpush1.bf16.msra.mxu0 0
        %947 = vmatprep.subr.bf16.mxu0 0
        %948 = vmatpush1.bf16.msra.mxu0 0
        %949 = vmatprep.subr.bf16.mxu0 0
        %950 = vmatpush1.bf16.msra.mxu0 0
        %951 = vmatprep.subr.bf16.mxu0 0
        %952 = vmatpush1.bf16.msra.mxu0 0
        %953 = vmatprep.subr.bf16.mxu0 0
        %954 = vmatpush1.bf16.msra.mxu0 0
        %955 = vmatprep.subr.bf16.mxu0 0
        %956 = vmatpush1.bf16.msra.mxu0 0
        %957 = vmatprep.mubr.bf16.mxu0 0
        %958 = vmatmul.mubr.bf16.gmra.mrb[0].mxu0 %v923
        %v959 = vpop.f32.mrb[0].mxu0
        %v960 = vadd.f32 0.0, %v959
        %v961 = vpop.f32.mrb[0].mxu0
        %v962 = vadd.f32 0.0, %v961
        %v963 = vpop.f32.mrb[0].mxu0
        %v964 = vadd.f32 0.0, %v963
        %v965 = vpop.f32.mrb[0].mxu0
        %v966 = vadd.f32 0.0, %v965
        %967 = vdwg.mxu0
        %s968 = scalar_lea.vmem [#allocation7], 16
        %v969 = vld [vmem:[%s968] sm:$0x3]
        %v971 = vlaneseq
        %v972 = vshrl.u32 %v971, 7
        %v973 = vsub.s32 0, %v972
        %v974 = vrot.slane %v969, %v973
        %v975 = vlaneseq
        %v976 = vshrl.u32 %v975, 7
        %v977 = vsub.s32 1, %v976
        %v978 = vrot.slane %v969, %v977
        %v981 = vmul.f32 %v960, %v974
        %v982 = vmul.f32 %v962, %v978
        %v983 = vmul.f32 %v964, %v974
        %v984 = vmul.f32 %v966, %v978
        %v985 = vadd.f32 %v899, %v981
        %v986 = vadd.f32 %v900, %v982
        %v987 = vadd.f32 %v901, %v983
        %v988 = vadd.f32 %v902, %v984
        %vm989 = vcmp.gt.f32.partialorder %v985, 0.0
        %vm990 = vcmp.gt.f32.partialorder %v986, 0.0
        %vm991 = vcmp.gt.f32.partialorder %v987, 0.0
        %vm992 = vcmp.gt.f32.partialorder %v988, 0.0
        %v993 = vmul.f32 %v985, 0.01
        %v994 = vmul.f32 %v986, 0.01
        %v995 = vmul.f32 %v987, 0.01
        %v996 = vmul.f32 %v988, 0.01
        %v997 = vsel %vm989, %v985, %v993
        %v998 = vsel %vm990, %v986, %v994
        %v999 = vsel %vm991, %v987, %v995
        %v1000 = vsel %vm992, %v988, %v996
        %1001 = vst [vmem:[%s217] sm:$0xff] %v997
        %1002 = vst [vmem:[%s217 + $0x8] sm:$0xff] %v998
        %1003 = vst [vmem:[%s217 + $0x10] sm:$0xff] %v999
        %1004 = vst [vmem:[%s217 + $0x18] sm:$0xff] %v1000
        %s1005 = sand.u32 %s97, 1
        %s1006 = scalar_lea.sflag [#allocation4], %s1005
        %s1007 = sand.u32 %s97, 1
        %s1008 = smul.addr %s1007, 32
        %s1009 = scalar_lea.vmem [#allocation8], %s1008
        // Predicated region
        $region45: #{tpu_custom_call.1} parent=31 // pred_check
          %p1010 = pneg %p107
        $region46: #{tpu_custom_call.1} parent=31 // pred_check_branch
          %1012 = sbr.rel (%p1010) target = $region48
        $region47: #{tpu_custom_call.1} parent=31 // pred_region
          %s1014 = ssub.s32 512, 512
          %1015 = vsyncadd %s1006, %s1014
          %s1016 = smul.addr %s21, 4
          %s1017 = smul.addr %s1016, 128
          %s1018 = scalar_lea.hbm %s3, %s1017
          %s1019 = sshll.u32 %s1009, 4
          %s1020 = int_to_ptr.vmem [resolvable:$true] %s1019
          %1025 = dma.vmem_to_hbm [thread:$0]  %s1020, 512, %s1018, %s1006, 256, 256, 16
        $region48: #{tpu_custom_call.1} parent=31 // pred_fallthru
          _
      $region32: #{tpu_custom_call.1} parent=5 // pred_fallthru
        _
      %p1026 = scmp.le.s32.totalorder 2, %s16
      // Predicated region
      $region49: #{tpu_custom_call.1} parent=5 // pred_check
        %p1027 = pneg %p1026
      $region50: #{tpu_custom_call.1} parent=5 // pred_check_branch
        %1029 = sbr.rel (%p1027) target = $region52
      $region51: #{tpu_custom_call.1} parent=5 // pred_region
        %s1030 = ssub.s32 %s16, 2
        // Predicated region
        $region53: #{tpu_custom_call.1} parent=51 // pred_check
          %p1031 = pneg %p113
        $region54: #{tpu_custom_call.1} parent=51 // pred_check_branch
          %1033 = sbr.rel (%p1031) target = $region56
        $region55: #{tpu_custom_call.1} parent=51 // pred_region
          %s1034 = sand.u32 %s98, 1
          %s1035 = scalar_lea.sflag [#allocation4], %s1034
          %s1036 = sand.u32 %s98, 1
          %s1037 = smul.addr %s1036, 32
          %s1038 = scalar_lea.vmem [#allocation8], %s1037
          %1039 = dma.done %s1035, 512
        $region56: #{tpu_custom_call.1} parent=51 // pred_fallthru
          _
      $region52: #{tpu_custom_call.1} parent=5 // pred_fallthru
        _
    $region6: #{tpu_custom_call.1} parent=1 // loop_footer
      %s20 = sadd.s32 1, %s16
    $region7: #{tpu_custom_call.1} parent=1 // loop_footer_branch
      %15 = sbr.rel target = $region3
    $region8: #{tpu_custom_call.1} parent=1 // loop_exit
      _
    %1040 = vsyncpa [#allocation3], 1
    %s1041 = scalar_lea.sflag [#allocation3], 1
    %1042 = vsyncpa %s1041, 1
    %1043 = vsyncpa [#allocation6], 1
    %1044 = vsyncpa [#allocation4], 1
    %s1045 = scalar_lea.sflag [#allocation4], 1
    %1046 = vsyncpa %s1045, 1

</llo_original>
